<compile_context>
chip_gen: v7x
topology: tpu7x:2x2x1
jax: 0.10.0
libtpu: 0.0.40
codegen_flags: <defaults>
</compile_context>

<pallas_src>
import functools

import jax
import jax.numpy as jnp
from jax import lax
from jax.experimental import pallas as pl
from jax.experimental.pallas import tpu as pltpu

_LANE = 128


def _ceil_div(a, b):
    return -(-a // b)


def _round_up(a, b):
    return _ceil_div(a, b) * b


def _epah_loss_kernel(u_ref, v_ref, s_ref, g_ref, w_ref, s1_ref, l_ref,
                      out_ref, acc_ref, *, code_length, mu):
    h = pl.program_id(0)          # parallel split of the N stream (megacore on v7x)
    i = pl.program_id(1)          # streaming / reduction axis over N tiles
    n_inner = pl.num_programs(1)

    @pl.when(i == 0)
    def _init():
        acc_ref[...] = jnp.zeros_like(acc_ref)

    u = u_ref[...]

    # d1 = u @ V_tile^T - code_length * S_tile (contract the code dim of both
    # operands; no materialized transpose of V anywhere).
    d1 = lax.dot_general(u, v_ref[...],
                         dimension_numbers=(((1,), (1,)), ((), ())),
                         preferred_element_type=jnp.float32)
    d1 = d1 - code_length * s_ref[...]
    acc_ref[...] += d1 * d1       # pure VPU work; cross-lane reduce deferred

    @pl.when(i == n_inner - 1)
    def _finalize():
        # The two tiny, N-independent terms are computed once per split from
        # resident blocks; only split 0 adds them to avoid double counting.
        d2 = lax.dot_general(u, g_ref[...],
                             dimension_numbers=(((1,), (1,)), ((), ())),
                             preferred_element_type=jnp.float32)
        d2 = d2 - code_length * s1_ref[...]
        d3 = jnp.dot(u, w_ref[...], preferred_element_type=jnp.float32) - l_ref[...]
        extra = mu * jnp.sum(d2 * d2) + jnp.sum(d3 * d3)
        extra = jnp.where(h == 0, extra, 0.0)
        total = jnp.sum(acc_ref[...]) + extra
        out_ref[...] = jnp.full(out_ref.shape, total, dtype=jnp.float32)


def epah_loss(u, g, V, S, S_1, W, L, *, code_length, num_train, mu,
              V_omega=None, tn_target=2048):
    """Pallas implementation of EPAHLoss.forward. Returns a scalar float32.

    V_omega is accepted for signature parity with the PyTorch module but is not
    used by the loss (the reference forward never uses it either).
    """
    del V_omega

    u = jnp.asarray(u, jnp.float32)
    g = jnp.asarray(g, jnp.float32)
    V = jnp.asarray(V, jnp.float32)
    # NOTE: S / S_1 entries are +-1 in EPAH; they could be streamed as bf16 for
    # another ~2x cut of the dominant HBM traffic. Kept f32 here for exact
    # parity with the f32 reference.
    S = jnp.asarray(S, jnp.float32)
    S_1 = jnp.asarray(S_1, jnp.float32)
    W = jnp.asarray(W, jnp.float32)
    L = jnp.asarray(L, jnp.float32)

    B, C = u.shape
    N = V.shape[0]
    K = W.shape[1]

    # ---- choose streaming tile (TN) along N and a 2-way split for dual-TC chips.
    if N <= tn_target:
        splits, tn, n_inner = 1, N, 1                  # one full-dim tile, no padding
    else:
        splits = 2
        tn = min(tn_target, _round_up(_ceil_div(N, splits), _LANE))
        n_tiles = _round_up(_ceil_div(N, tn), splits)
        tn = _round_up(_ceil_div(N, n_tiles), _LANE)   # shrink tile -> minimal padding
        n_inner = n_tiles // splits
    n_pad = splits * n_inner * tn
    if n_pad != N:
        # Zero padding is exact: padded columns give (u @ 0 - code_length*0)^2 = 0.
        V = jnp.pad(V, ((0, n_pad - N), (0, 0)))
        S = jnp.pad(S, ((0, 0), (0, n_pad - N)))

    kernel = functools.partial(_epah_loss_kernel,
                               code_length=float(code_length), mu=float(mu))

    resident = lambda h, i: (0, 0)
    grid_spec = pltpu.PrefetchScalarGridSpec(
        num_scalar_prefetch=0,
        grid=(splits, n_inner),
        in_specs=[
            pl.BlockSpec((B, C), resident),                             # u   (resident)
            pl.BlockSpec((tn, C), lambda h, i: (h * n_inner + i, 0)),   # V   (streamed)
            pl.BlockSpec((B, tn), lambda h, i: (0, h * n_inner + i)),   # S   (streamed)
            pl.BlockSpec((B, C), resident),                             # g   (resident)
            pl.BlockSpec((C, K), resident),                             # W   (resident)
            pl.BlockSpec((B, B), resident),                             # S_1 (resident)
            pl.BlockSpec((B, K), resident),                             # L   (resident)
        ],
        # One lane-dense (1, 8, 128) partial per split; wrapper reads [:, 0, 0].
        out_specs=pl.BlockSpec((1, 8, _LANE), lambda h, i: (h, 0, 0)),
        scratch_shapes=[pltpu.VMEM((B, tn), jnp.float32)],
    )

    flops = 2 * B * C * (n_pad + B + K) + 3 * B * (n_pad + B + K)
    bytes_accessed = 4 * (n_pad * C + B * n_pad + 2 * B * C + C * K + B * B + B * K)

    partials = pl.pallas_call(
        kernel,
        grid_spec=grid_spec,
        out_shape=jax.ShapeDtypeStruct((splits, 8, _LANE), jnp.float32),
        compiler_params=pltpu.CompilerParams(
            dimension_semantics=("parallel", "arbitrary"),
            vmem_limit_bytes=32 * 1024 * 1024),
        cost_estimate=pl.CostEstimate(flops=flops, transcendentals=0,
                                      bytes_accessed=bytes_accessed),
    )(u, V, S, g, W, S_1, L)

    return jnp.sum(partials[:, 0, 0]) / (float(num_train) * float(B))


def _reference(u, g, V, S, S_1, W, L, *, code_length, num_train, mu):
    batch_size = u.shape[0]
    sq = (u @ V.T - code_length * S) ** 2
    sq1 = mu * (u @ g.T - code_length * S_1) ** 2
    lab = (u @ W - L) ** 2
    return (sq.sum() + lab.sum() + sq1.sum()) / (num_train * batch_size)


if __name__ == "__main__":
    # Small, forward-consistent shapes.
    batch_size = 8
    code_length = 32
    num_train = 64
    num_classes = 16
    mu = 0.5

    key = jax.random.PRNGKey(0)
    ks = jax.random.split(key, 7)
    u = jax.random.normal(ks[0], (batch_size, code_length), jnp.float32)
    g = jax.random.normal(ks[1], (batch_size, code_length), jnp.float32)
    V = jax.random.normal(ks[2], (num_train, code_length), jnp.float32)
    S = jnp.sign(jax.random.normal(ks[3], (batch_size, num_train), jnp.float32))
    S_1 = jnp.sign(jax.random.normal(ks[4], (batch_size, batch_size), jnp.float32))
    # Deterministically "initialized" projection matrix W (synthetic parameter).
    W = jax.random.normal(ks[5], (code_length, num_classes), jnp.float32) * 0.1
    L = (jax.random.uniform(ks[6], (batch_size, num_classes)) > 0.5).astype(jnp.float32)

    loss = epah_loss(u, g, V, S, S_1, W, L,
                     code_length=code_length, num_train=num_train, mu=mu)
    jax.block_until_ready(loss)

    ref = _reference(u, g, V, S, S_1, W, L,
                     code_length=code_length, num_train=num_train, mu=mu)
    assert jnp.allclose(loss, ref, rtol=1e-5, atol=1e-4), (loss, ref)

    print("KERNEL_OK")
</pallas_src>

<mosaic_0001>
module attributes {stable_mosaic.version = 11 : i64} {
  func.func @_epah_loss_kernel(%arg0: i32, %arg1: i32, %arg2: memref<8x32xf32, #tpu.memory_space<vmem>>, %arg3: memref<64x32xf32, #tpu.memory_space<vmem>>, %arg4: memref<8x64xf32, #tpu.memory_space<vmem>>, %arg5: memref<8x32xf32, #tpu.memory_space<vmem>>, %arg6: memref<32x16xf32, #tpu.memory_space<vmem>>, %arg7: memref<8x8xf32, #tpu.memory_space<vmem>>, %arg8: memref<8x16xf32, #tpu.memory_space<vmem>>, %arg9: memref<1x8x128xf32, #tpu.memory_space<vmem>>, %arg10: memref<8x64xf32, #tpu.memory_space<vmem>>) attributes {dimension_semantics = [#tpu.dimension_semantics<parallel>, #tpu.dimension_semantics<arbitrary>], iteration_bounds = array<i64: 1, 1>, scalar_prefetch = 0 : i64, scratch_operands = 1 : i64, tpu.core_type = #tpu.core_type<tc>, window_params = [{pipeline_mode = #tpu.pipeline_mode<synchronous>, transform_indices = @transform_0, window_bounds = array<i64: 8, 32>}, {transform_indices = @transform_1, window_bounds = array<i64: 64, 32>}, {transform_indices = @transform_2, window_bounds = array<i64: 8, 64>}, {pipeline_mode = #tpu.pipeline_mode<synchronous>, transform_indices = @transform_3, window_bounds = array<i64: 8, 32>}, {pipeline_mode = #tpu.pipeline_mode<synchronous>, transform_indices = @transform_4, window_bounds = array<i64: 32, 16>}, {pipeline_mode = #tpu.pipeline_mode<synchronous>, transform_indices = @transform_5, window_bounds = array<i64: 8, 8>}, {pipeline_mode = #tpu.pipeline_mode<synchronous>, transform_indices = @transform_6, window_bounds = array<i64: 8, 16>}, {transform_indices = @transform_7, window_bounds = array<i64: 1, 8, 128>}]} {
    %c0_i32 = arith.constant 0 : i32
    %0 = arith.cmpi eq, %arg1, %c0_i32 : i32
    %1 = arith.extui %0 : i1 to i32
    %c0_i32_0 = arith.constant 0 : i32
    %2 = arith.cmpi ne, %1, %c0_i32_0 : i32
    scf.if %2 {
      %cst_13 = arith.constant 0.000000e+00 : f32
      %17 = vector.broadcast %cst_13 : f32 to vector<8x64xf32>
      %c0_14 = arith.constant 0 : index
      %c0_15 = arith.constant 0 : index
      %18 = vector.load %arg10[%c0_14, %c0_15] : memref<8x64xf32, #tpu.memory_space<vmem>>, vector<8x64xf32>
      tpu.vector_store %arg10[%c0_14, %c0_15], %17 {strides = array<i32>} : memref<8x64xf32, #tpu.memory_space<vmem>>, vector<8x64xf32>,
    } else {
    }
    %c0 = arith.constant 0 : index
    %c0_1 = arith.constant 0 : index
    %3 = vector.load %arg2[%c0, %c0_1] : memref<8x32xf32, #tpu.memory_space<vmem>>, vector<8x32xf32>
    %c0_2 = arith.constant 0 : index
    %c0_3 = arith.constant 0 : index
    %4 = vector.load %arg3[%c0_2, %c0_3] : memref<64x32xf32, #tpu.memory_space<vmem>>, vector<64x32xf32>
    %cst = arith.constant dense<0.000000e+00> : vector<8x64xf32>
    %5 = tpu.matmul %3, %4, %cst {dimension_numbers = #tpu.dot_dimension_numbers<[1], [1], [0], [0], [0, 0, 1, 0], [], []>} : vector<8x32xf32>, vector<64x32xf32>, vector<8x64xf32> -> vector<8x64xf32>
    %c0_4 = arith.constant 0 : index
    %c0_5 = arith.constant 0 : index
    %6 = vector.load %arg4[%c0_4, %c0_5] : memref<8x64xf32, #tpu.memory_space<vmem>>, vector<8x64xf32>
    %cst_6 = arith.constant 3.200000e+01 : f32
    %7 = vector.broadcast %cst_6 : f32 to vector<8x64xf32>
    %8 = arith.mulf %7, %6 : vector<8x64xf32>
    %9 = arith.subf %5, %8 : vector<8x64xf32>
    %c0_7 = arith.constant 0 : index
    %c0_8 = arith.constant 0 : index
    %10 = vector.load %arg10[%c0_7, %c0_8] : memref<8x64xf32, #tpu.memory_space<vmem>>, vector<8x64xf32>
    %11 = arith.mulf %9, %9 : vector<8x64xf32>
    %12 = arith.addf %10, %11 : vector<8x64xf32>
    %c0_9 = arith.constant 0 : index
    %c0_10 = arith.constant 0 : index
    %13 = vector.load %arg10[%c0_9, %c0_10] : memref<8x64xf32, #tpu.memory_space<vmem>>, vector<8x64xf32>
    tpu.vector_store %arg10[%c0_9, %c0_10], %12 {strides = array<i32>} : memref<8x64xf32, #tpu.memory_space<vmem>>, vector<8x64xf32>,
    %c0_i32_11 = arith.constant 0 : i32
    %14 = arith.cmpi eq, %arg1, %c0_i32_11 : i32
    %15 = arith.extui %14 : i1 to i32
    %c0_i32_12 = arith.constant 0 : i32
    %16 = arith.cmpi ne, %15, %c0_i32_12 : i32
    scf.if %16 {
      %c0_13 = arith.constant 0 : index
      %c0_14 = arith.constant 0 : index
      %17 = vector.load %arg5[%c0_13, %c0_14] : memref<8x32xf32, #tpu.memory_space<vmem>>, vector<8x32xf32>
      %cst_15 = arith.constant dense<0.000000e+00> : vector<8x8xf32>
      %18 = tpu.matmul %3, %17, %cst_15 {dimension_numbers = #tpu.dot_dimension_numbers<[1], [1], [0], [0], [0, 0, 1, 0], [], []>} : vector<8x32xf32>, vector<8x32xf32>, vector<8x8xf32> -> vector<8x8xf32>
      %c0_16 = arith.constant 0 : index
      %c0_17 = arith.constant 0 : index
      %19 = vector.load %arg7[%c0_16, %c0_17] : memref<8x8xf32, #tpu.memory_space<vmem>>, vector<8x8xf32>
      %cst_18 = arith.constant 3.200000e+01 : f32
      %20 = vector.broadcast %cst_18 : f32 to vector<8x8xf32>
      %21 = arith.mulf %20, %19 : vector<8x8xf32>
      %22 = arith.subf %18, %21 : vector<8x8xf32>
      %c0_19 = arith.constant 0 : index
      %c0_20 = arith.constant 0 : index
      %23 = vector.load %arg6[%c0_19, %c0_20] : memref<32x16xf32, #tpu.memory_space<vmem>>, vector<32x16xf32>
      %cst_21 = arith.constant dense<0.000000e+00> : vector<8x16xf32>
      %24 = tpu.matmul %3, %23, %cst_21 {dimension_numbers = #tpu.dot_dimension_numbers<[1], [0], [0], [1], [0, 0, 1, 1], [], []>} : vector<8x32xf32>, vector<32x16xf32>, vector<8x16xf32> -> vector<8x16xf32>
      %c0_22 = arith.constant 0 : index
      %c0_23 = arith.constant 0 : index
      %25 = vector.load %arg8[%c0_22, %c0_23] : memref<8x16xf32, #tpu.memory_space<vmem>>, vector<8x16xf32>
      %26 = arith.subf %24, %25 : vector<8x16xf32>
      %27 = arith.mulf %22, %22 : vector<8x8xf32>
      %28 = vector.shape_cast %27 : vector<8x8xf32> to vector<1x8x8xf32>
      %cst_24 = arith.constant dense<0.000000e+00> : vector<1xf32>
      %29 = vector.multi_reduction <add>, %28, %cst_24 [1, 2] : vector<1x8x8xf32> to vector<1xf32>
      %30 = vector.shape_cast %29 : vector<1xf32> to vector<1x1x1xf32>
      %31 = vector.extract %30[0, 0, 0] : f32 from vector<1x1x1xf32>
      %cst_25 = arith.constant 5.000000e-01 : f32
      %32 = arith.mulf %cst_25, %31 : f32
      %33 = arith.mulf %26, %26 : vector<8x16xf32>
      %34 = vector.shape_cast %33 : vector<8x16xf32> to vector<1x8x16xf32>
      %cst_26 = arith.constant dense<0.000000e+00> : vector<1xf32>
      %35 = vector.multi_reduction <add>, %34, %cst_26 [1, 2] : vector<1x8x16xf32> to vector<1xf32>
      %36 = vector.shape_cast %35 : vector<1xf32> to vector<1x1x1xf32>
      %37 = vector.extract %36[0, 0, 0] : f32 from vector<1x1x1xf32>
      %38 = arith.addf %32, %37 : f32
      %c0_i32_27 = arith.constant 0 : i32
      %39 = arith.cmpi eq, %arg0, %c0_i32_27 : i32
      %cst_28 = arith.constant 0.000000e+00 : f32
      %40 = arith.select %39, %38, %cst_28 : f32
      %c0_29 = arith.constant 0 : index
      %c0_30 = arith.constant 0 : index
      %41 = vector.load %arg10[%c0_29, %c0_30] : memref<8x64xf32, #tpu.memory_space<vmem>>, vector<8x64xf32>
      %42 = vector.shape_cast %41 : vector<8x64xf32> to vector<1x8x64xf32>
      %cst_31 = arith.constant dense<0.000000e+00> : vector<1xf32>
      %43 = vector.multi_reduction <add>, %42, %cst_31 [1, 2] : vector<1x8x64xf32> to vector<1xf32>
      %44 = vector.shape_cast %43 : vector<1xf32> to vector<1x1x1xf32>
      %45 = vector.extract %44[0, 0, 0] : f32 from vector<1x1x1xf32>
      %46 = arith.addf %45, %40 : f32
      %47 = vector.broadcast %46 : f32 to vector<1x8x128xf32>
      %c0_32 = arith.constant 0 : index
      %c0_33 = arith.constant 0 : index
      %c0_34 = arith.constant 0 : index
      %48 = vector.load %arg9[%c0_32, %c0_33, %c0_34] : memref<1x8x128xf32, #tpu.memory_space<vmem>>, vector<1x8x128xf32>
      tpu.vector_store %arg9[%c0_32, %c0_33, %c0_34], %47 {strides = array<i32>} : memref<1x8x128xf32, #tpu.memory_space<vmem>>, vector<1x8x128xf32>,
    } else {
    }
    return
  }
  func.func @transform_0(%arg0: i32, %arg1: i32) -> (i32, i32) {
    %c0_i32 = arith.constant 0 : i32
    %c0_i32_0 = arith.constant 0 : i32
    %c0_i32_1 = arith.constant 0 : i32
    return %c0_i32, %c0_i32_0 : i32, i32
  }
  func.func @transform_1(%arg0: i32, %arg1: i32) -> (i32, i32) {
    %c1_i32 = arith.constant 1 : i32
    %0 = arith.muli %arg0, %c1_i32 : i32
    %1 = arith.addi %0, %arg1 : i32
    %c0_i32 = arith.constant 0 : i32
    %c0_i32_0 = arith.constant 0 : i32
    return %1, %c0_i32 : i32, i32
  }
  func.func @transform_2(%arg0: i32, %arg1: i32) -> (i32, i32) {
    %c1_i32 = arith.constant 1 : i32
    %0 = arith.muli %arg0, %c1_i32 : i32
    %1 = arith.addi %0, %arg1 : i32
    %c0_i32 = arith.constant 0 : i32
    %c0_i32_0 = arith.constant 0 : i32
    return %c0_i32, %1 : i32, i32
  }
  func.func @transform_3(%arg0: i32, %arg1: i32) -> (i32, i32) {
    %c0_i32 = arith.constant 0 : i32
    %c0_i32_0 = arith.constant 0 : i32
    %c0_i32_1 = arith.constant 0 : i32
    return %c0_i32, %c0_i32_0 : i32, i32
  }
  func.func @transform_4(%arg0: i32, %arg1: i32) -> (i32, i32) {
    %c0_i32 = arith.constant 0 : i32
    %c0_i32_0 = arith.constant 0 : i32
    %c0_i32_1 = arith.constant 0 : i32
    return %c0_i32, %c0_i32_0 : i32, i32
  }
  func.func @transform_5(%arg0: i32, %arg1: i32) -> (i32, i32) {
    %c0_i32 = arith.constant 0 : i32
    %c0_i32_0 = arith.constant 0 : i32
    %c0_i32_1 = arith.constant 0 : i32
    return %c0_i32, %c0_i32_0 : i32, i32
  }
  func.func @transform_6(%arg0: i32, %arg1: i32) -> (i32, i32) {
    %c0_i32 = arith.constant 0 : i32
    %c0_i32_0 = arith.constant 0 : i32
    %c0_i32_1 = arith.constant 0 : i32
    return %c0_i32, %c0_i32_0 : i32, i32
  }
  func.func @transform_7(%arg0: i32, %arg1: i32) -> (i32, i32, i32) {
    %c0_i32 = arith.constant 0 : i32
    %c0_i32_0 = arith.constant 0 : i32
    %c0_i32_1 = arith.constant 0 : i32
    return %arg0, %c0_i32, %c0_i32_0 : i32, i32, i32
  }
}

</mosaic_0001>

<llo_original>
// kernel: tpu_custom_call.1
$region0: #{tpu_custom_call.1}
  #allocation0 [shape = 'u32[]', space=smem, size = 0x4, offset = 0x4, fixed_abs, tag = 'smem constant byte address 0x4 - core index']
  #allocation1 [shape = 'u32[144,128]{1,0:T(1,128)}', space=vmem, size = 0x12000, scoped, tag = 'internal scratch']
  #allocation2 [shape = 'f32[8,64]{1,0:T(8,128)}', space=vmem, size = 0x1000, scoped, tag = 'scratch operand']
  %s0 = inlined_call_operand.vmem [shape: f32[8,32], index: 0, kind: input, shape index: {}]
  %s1 = inlined_call_operand.vmem [shape: f32[64,32], index: 1, kind: input, shape index: {}]
  %s2 = inlined_call_operand.vmem [shape: f32[8,64], index: 2, kind: input, shape index: {}]
  %s3 = inlined_call_operand.vmem [shape: f32[8,32], index: 3, kind: input, shape index: {}]
  %s4 = inlined_call_operand.vmem [shape: f32[32,16], index: 4, kind: input, shape index: {}]
  %s5 = inlined_call_operand.vmem [shape: f32[8,8], index: 5, kind: input, shape index: {}]
  %s6 = inlined_call_operand.vmem [shape: f32[8,16], index: 6, kind: input, shape index: {}]
  %s7 = inlined_call_operand.hbm [shape: f32[1,8,128], index: 7, kind: output, shape index: {}]
  %s8 = sld [smem:[#allocation0]]
  $region46: #{tpu_custom_call.1} parent=0
    _
  %s10 = ssub.s32 1, %s8
  %s11 = scalar_select 0, %s10, %s8
  $region1: #{tpu_custom_call.1} parent=0
    #allocation3 [shape = 'u8[4096]{0}', space=vmem, size = 0x1000, scoped, tag = 'output window, operand 0, single buffered']
    #allocation4 [shape = 's32[1]{0}', space=sflag, size = 0x4, scoped, tag = 'scoped memory for tpu_custom_call.1']
    %12 = vsyncpa [#allocation4], 0
    // Predicated region
    $region2: #{tpu_custom_call.1} parent=1 // pred_check
      _
    $region3: #{tpu_custom_call.1} parent=1 // pred_check_branch
      %14 = sbr.rel (0) target = $region5
    $region4: #{tpu_custom_call.1} parent=1 // pred_region
      _
    $region5: #{tpu_custom_call.1} parent=1 // pred_fallthru
      _
    // Predicated region
    $region6: #{tpu_custom_call.1} parent=1 // pred_check
      _
    $region7: #{tpu_custom_call.1} parent=1 // pred_check_branch
      %16 = sbr.rel (0) target = $region9
    $region8: #{tpu_custom_call.1} parent=1 // pred_region
      %s17 = sadd.s32 0, 0
      %s18 = smul.u32 8, %s17
      %p19 = scmp.lt.s32.totalorder %s18, 7
      %s20 = scalar_select %p19, %s18, 7
      %s21 = smul.addr %s20, 8
      %s22 = scalar_lea.vmem %s1, %s21
      %s23 = sadd.s32 0, 0
      %s24 = smul.u32 8, %s23
    $region9: #{tpu_custom_call.1} parent=1 // pred_fallthru
      _
    // Predicated region
    $region10: #{tpu_custom_call.1} parent=1 // pred_check
      _
    $region11: #{tpu_custom_call.1} parent=1 // pred_check_branch
      %26 = sbr.rel (0) target = $region13
    $region12: #{tpu_custom_call.1} parent=1 // pred_region
      %s27 = sadd.s32 0, 0
      %p28 = scmp.lt.s32.totalorder %s27, 0
      %s29 = scalar_select %p28, %s27, 0
      %s30 = smul.addr %s29, 8
      %s31 = scalar_lea.vmem %s2, %s30
      %s32 = sadd.s32 0, 0
    $region13: #{tpu_custom_call.1} parent=1 // pred_fallthru
      _
    // Predicated region
    $region14: #{tpu_custom_call.1} parent=1 // pred_check
      _
    $region15: #{tpu_custom_call.1} parent=1 // pred_check_branch
      %34 = sbr.rel (0) target = $region17
    $region16: #{tpu_custom_call.1} parent=1 // pred_region
      _
    $region17: #{tpu_custom_call.1} parent=1 // pred_fallthru
      _
    // Predicated region
    $region18: #{tpu_custom_call.1} parent=1 // pred_check
      _
    $region19: #{tpu_custom_call.1} parent=1 // pred_check_branch
      %36 = sbr.rel (0) target = $region21
    $region20: #{tpu_custom_call.1} parent=1 // pred_region
      _
    $region21: #{tpu_custom_call.1} parent=1 // pred_fallthru
      _
    // Predicated region
    $region22: #{tpu_custom_call.1} parent=1 // pred_check
      _
    $region23: #{tpu_custom_call.1} parent=1 // pred_check_branch
      %38 = sbr.rel (0) target = $region25
    $region24: #{tpu_custom_call.1} parent=1 // pred_region
      _
    $region25: #{tpu_custom_call.1} parent=1 // pred_fallthru
      _
    // Predicated region
    $region26: #{tpu_custom_call.1} parent=1 // pred_check
      _
    $region27: #{tpu_custom_call.1} parent=1 // pred_check_branch
      %40 = sbr.rel (0) target = $region29
    $region28: #{tpu_custom_call.1} parent=1 // pred_region
      _
    $region29: #{tpu_custom_call.1} parent=1 // pred_fallthru
      _
    %s41 = sadd.s32 0, 0
    %s42 = smul.u32 8, %s41
    %p43 = scmp.lt.s32.totalorder %s42, 7
    %s44 = scalar_select %p43, %s42, 7
    %s45 = smul.addr %s44, 8
    %s46 = scalar_lea.vmem %s1, %s45
    %s47 = sadd.s32 0, 0
    %p48 = scmp.lt.s32.totalorder %s47, 0
    %s49 = scalar_select %p48, %s47, 0
    %s50 = smul.addr %s49, 8
    %s51 = scalar_lea.vmem %s2, %s50
    %s52 = sadd.s32 0, 0
    %s53 = smul.u32 8, %s52
    %p54 = scmp.lt.s32.totalorder %s53, 7
    %s55 = scalar_select %p54, %s53, 7
    %s56 = smul.addr %s55, 8
    %s57 = scalar_lea.vmem %s1, %s56
    %s58 = sadd.s32 0, 0
    %s59 = smul.u32 8, %s58
    %s60 = sadd.s32 0, 0
    %p61 = scmp.lt.s32.totalorder %s60, 0
    %s62 = scalar_select %p61, %s60, 0
    %s63 = smul.addr %s62, 8
    %s64 = scalar_lea.vmem %s2, %s63
    %s65 = sadd.s32 0, 0
    %p66 = scmp.eq.s32.totalorder 0, 0
    // Predicated region
    $region30: #{tpu_custom_call.1} parent=1 // pred_check
      %p67 = pneg %p66
    $region31: #{tpu_custom_call.1} parent=1 // pred_check_branch
      %69 = sbr.rel (%p67) target = $region33
    $region32: #{tpu_custom_call.1} parent=1 // pred_region
      %vm70 = vcmask 523264
      %71 = vst.msk [vmem:[#allocation2] sm:$0xff] %vm70, 0.0
    $region33: #{tpu_custom_call.1} parent=1 // pred_fallthru
      _
    %v72 = vld [vmem:[%s0] sm:$0xff]
    %v73 = vld [vmem:[%s57] sm:$0xff]
    %v74 = vld [vmem:[%s57 + $0x8] sm:$0xff]
    %v75 = vld [vmem:[%s57 + $0x10] sm:$0xff]
    %v76 = vld [vmem:[%s57 + $0x18] sm:$0xff]
    %v77 = vld [vmem:[%s57 + $0x20] sm:$0xff]
    %v78 = vld [vmem:[%s57 + $0x28] sm:$0xff]
    %v79 = vld [vmem:[%s57 + $0x30] sm:$0xff]
    %v80 = vld [vmem:[%s57 + $0x38] sm:$0xff]
    %vm81 = vcmask 261120
    %v83 = vsel %vm81, %v72, 0
    %v86 = vsel %vm81, %v73, 0
    %v89 = vsel %vm81, %v74, 0
    %v92 = vsel %vm81, %v75, 0
    %v95 = vsel %vm81, %v76, 0
    %v98 = vsel %vm81, %v77, 0
    %v101 = vsel %vm81, %v78, 0
    %v104 = vsel %vm81, %v79, 0
    %v107 = vsel %vm81, %v80, 0
    %109 = vmatprep.subr.mxu0 0.0
    %110 = vmatpush1.xpose.msra.mxu0 %v86
    %111 = vmatprep.subr.mxu0 0.0
    %112 = vmatpush1.xpose.msra.mxu0 %v89
    %113 = vmatprep.subr.mxu0 0.0
    %114 = vmatpush1.xpose.msra.mxu0 %v92
    %115 = vmatprep.subr.mxu0 0.0
    %116 = vmatpush1.xpose.msra.mxu0 %v95
    %117 = vmatprep.subr.mxu0 0.0
    %118 = vmatpush1.xpose.msra.mxu0 %v98
    %119 = vmatprep.subr.mxu0 0.0
    %120 = vmatpush1.xpose.msra.mxu0 %v101
    %121 = vmatprep.subr.mxu0 0.0
    %122 = vmatpush1.xpose.msra.mxu0 %v104
    %123 = vmatprep.subr.mxu0 0.0
    %124 = vmatpush1.xpose.msra.mxu0 %v107
    %125 = vmatprep.subr.mxu0 0.0
    %126 = vmatpush1.xpose.msra.mxu0 0.0
    %127 = vmatprep.subr.mxu0 0.0
    %128 = vmatpush1.xpose.msra.mxu0 0.0
    %129 = vmatprep.subr.mxu0 0.0
    %130 = vmatpush1.xpose.msra.mxu0 0.0
    %131 = vmatprep.subr.mxu0 0.0
    %132 = vmatpush1.xpose.msra.mxu0 0.0
    %133 = vmatprep.subr.mxu0 0.0
    %134 = vmatpush1.xpose.msra.mxu0 0.0
    %135 = vmatprep.subr.mxu0 0.0
    %136 = vmatpush1.xpose.msra.mxu0 0.0
    %137 = vmatprep.subr.mxu0 0.0
    %138 = vmatpush1.xpose.msra.mxu0 0.0
    %139 = vmatprep.subr.mxu0 0.0
    %140 = vmatpush1.xpose.msra.mxu0 0.0
    %141 = vmatprep.subr.mxu0 0.0
    %142 = vmatpush1.xpose.msra.mxu0 0.0
    %143 = vmatprep.subr.mxu0 0.0
    %144 = vmatpush1.xpose.msra.mxu0 0.0
    %145 = vmatprep.subr.mxu0 0.0
    %146 = vmatpush1.xpose.msra.mxu0 0.0
    %147 = vmatprep.subr.mxu0 0.0
    %148 = vmatpush1.xpose.msra.mxu0 0.0
    %149 = vmatprep.subr.mxu0 0.0
    %150 = vmatpush1.xpose.msra.mxu0 0.0
    %151 = vmatprep.subr.mxu0 0.0
    %152 = vmatpush1.xpose.msra.mxu0 0.0
    %153 = vmatprep.subr.mxu0 0.0
    %154 = vmatpush1.xpose.msra.mxu0 0.0
    %155 = vmatprep.subr.mxu0 0.0
    %156 = vmatpush1.xpose.msra.mxu0 0.0
    %157 = vmatprep.subr.mxu0 0.0
    %158 = vmatpush1.xpose.msra.mxu0 0.0
    %159 = vmatprep.subr.mxu0 0.0
    %160 = vmatpush1.xpose.msra.mxu0 0.0
    %161 = vmatprep.subr.mxu0 0.0
    %162 = vmatpush1.xpose.msra.mxu0 0.0
    %163 = vmatprep.subr.mxu0 0.0
    %164 = vmatpush1.xpose.msra.mxu0 0.0
    %165 = vmatprep.subr.mxu0 0.0
    %166 = vmatpush1.xpose.msra.mxu0 0.0
    %167 = vmatprep.subr.mxu0 0.0
    %168 = vmatpush1.xpose.msra.mxu0 0.0
    %169 = vmatprep.subr.mxu0 0.0
    %170 = vmatpush1.xpose.msra.mxu0 0.0
    %171 = vmatprep.subr.mxu0 0.0
    %172 = vmatpush1.xpose.msra.mxu0 0.0
    %173 = vmatprep.mubr.f32.mxu0 0.0
    %174 = vmatmul.mubr.f32.gmra.mrb[0].mxu0 %v83
    %v175 = vpop.f32.mrb[0].mxu0
    %v176 = vadd.f32 0.0, %v175
    %v177 = vpop.f32.mrb[0].mxu0
    %178 = vdwg.mxu0
    %v179 = vld [vmem:[%s64] sm:$0xff]
    %v180 = vmul.f32 %v179, 32.0
    %v181 = vsub.f32 %v176, %v180
    %v182 = vld [vmem:[#allocation2] sm:$0xff]
    %v183 = vmul.f32 %v181, %v181
    %v184 = vadd.f32 %v182, %v183
    %vm185 = vcmask 523264
    %186 = vst.msk [vmem:[#allocation2] sm:$0xff] %vm185, %v184
    // Predicated region
    $region34: #{tpu_custom_call.1} parent=1 // pred_check
      %p187 = pneg %p66
    $region35: #{tpu_custom_call.1} parent=1 // pred_check_branch
      %189 = sbr.rel (%p187) target = $region37
    $region36: #{tpu_custom_call.1} parent=1 // pred_region
      %v190 = vld [vmem:[%s3] sm:$0xff]
      %v192 = vsel %vm81, %v190, 0
      %194 = vmatprep.subr.mxu0 0.0
      %195 = vmatpush1.xpose.msra.mxu0 %v192
      %196 = vmatprep.subr.mxu0 0.0
      %197 = vmatpush1.xpose.msra.mxu0 0.0
      %198 = vmatprep.subr.mxu0 0.0
      %199 = vmatpush1.xpose.msra.mxu0 0.0
      %200 = vmatprep.subr.mxu0 0.0
      %201 = vmatpush1.xpose.msra.mxu0 0.0
      %202 = vmatprep.subr.mxu0 0.0
      %203 = vmatpush1.xpose.msra.mxu0 0.0
      %204 = vmatprep.subr.mxu0 0.0
      %205 = vmatpush1.xpose.msra.mxu0 0.0
      %206 = vmatprep.subr.mxu0 0.0
      %207 = vmatpush1.xpose.msra.mxu0 0.0
      %208 = vmatprep.subr.mxu0 0.0
      %209 = vmatpush1.xpose.msra.mxu0 0.0
      %210 = vmatprep.subr.mxu0 0.0
      %211 = vmatpush1.xpose.msra.mxu0 0.0
      %212 = vmatprep.subr.mxu0 0.0
      %213 = vmatpush1.xpose.msra.mxu0 0.0
      %214 = vmatprep.subr.mxu0 0.0
      %215 = vmatpush1.xpose.msra.mxu0 0.0
      %216 = vmatprep.subr.mxu0 0.0
      %217 = vmatpush1.xpose.msra.mxu0 0.0
      %218 = vmatprep.subr.mxu0 0.0
      %219 = vmatpush1.xpose.msra.mxu0 0.0
      %220 = vmatprep.subr.mxu0 0.0
      %221 = vmatpush1.xpose.msra.mxu0 0.0
      %222 = vmatprep.subr.mxu0 0.0
      %223 = vmatpush1.xpose.msra.mxu0 0.0
      %224 = vmatprep.subr.mxu0 0.0
      %225 = vmatpush1.xpose.msra.mxu0 0.0
      %226 = vmatprep.subr.mxu0 0.0
      %227 = vmatpush1.xpose.msra.mxu0 0.0
      %228 = vmatprep.subr.mxu0 0.0
      %229 = vmatpush1.xpose.msra.mxu0 0.0
      %230 = vmatprep.subr.mxu0 0.0
      %231 = vmatpush1.xpose.msra.mxu0 0.0
      %232 = vmatprep.subr.mxu0 0.0
      %233 = vmatpush1.xpose.msra.mxu0 0.0
      %234 = vmatprep.subr.mxu0 0.0
      %235 = vmatpush1.xpose.msra.mxu0 0.0
      %236 = vmatprep.subr.mxu0 0.0
      %237 = vmatpush1.xpose.msra.mxu0 0.0
      %238 = vmatprep.subr.mxu0 0.0
      %239 = vmatpush1.xpose.msra.mxu0 0.0
      %240 = vmatprep.subr.mxu0 0.0
      %241 = vmatpush1.xpose.msra.mxu0 0.0
      %242 = vmatprep.subr.mxu0 0.0
      %243 = vmatpush1.xpose.msra.mxu0 0.0
      %244 = vmatprep.subr.mxu0 0.0
      %245 = vmatpush1.xpose.msra.mxu0 0.0
      %246 = vmatprep.subr.mxu0 0.0
      %247 = vmatpush1.xpose.msra.mxu0 0.0
      %248 = vmatprep.subr.mxu0 0.0
      %249 = vmatpush1.xpose.msra.mxu0 0.0
      %250 = vmatprep.subr.mxu0 0.0
      %251 = vmatpush1.xpose.msra.mxu0 0.0
      %252 = vmatprep.subr.mxu0 0.0
      %253 = vmatpush1.xpose.msra.mxu0 0.0
      %254 = vmatprep.subr.mxu0 0.0
      %255 = vmatpush1.xpose.msra.mxu0 0.0
      %256 = vmatprep.subr.mxu0 0.0
      %257 = vmatpush1.xpose.msra.mxu0 0.0
      %258 = vmatprep.mubr.f32.mxu0 0.0
      %259 = vmatmul.mubr.f32.gmra.mrb[0].mxu0 %v83
      %v260 = vpop.f32.mrb[0].mxu0
      %v261 = vadd.f32 0.0, %v260
      %v262 = vpop.f32.mrb[0].mxu0
      %263 = vdwg.mxu0
      %v264 = vld [vmem:[%s5] sm:$0xff]
      %v265 = vmul.f32 %v264, 32.0
      %v266 = vsub.f32 %v261, %v265
      %v267 = vld [vmem:[%s4] sm:$0xff]
      %v268 = vld [vmem:[%s4 + $0x8] sm:$0xff]
      %v269 = vld [vmem:[%s4 + $0x10] sm:$0xff]
      %v270 = vld [vmem:[%s4 + $0x18] sm:$0xff]
      %271 = vmatprep.subr.mxu0 0.0
      %272 = vmatpush1.msra.mxu0 %v267
      %273 = vmatprep.subr.mxu0 0.0
      %274 = vmatpush1.msra.mxu0 %v268
      %275 = vmatprep.subr.mxu0 0.0
      %276 = vmatpush1.msra.mxu0 %v269
      %277 = vmatprep.subr.mxu0 0.0
      %278 = vmatpush1.msra.mxu0 %v270
      %279 = vmatprep.subr.mxu0 0.0
      %280 = vmatpush1.msra.mxu0 0.0
      %281 = vmatprep.subr.mxu0 0.0
      %282 = vmatpush1.msra.mxu0 0.0
      %283 = vmatprep.subr.mxu0 0.0
      %284 = vmatpush1.msra.mxu0 0.0
      %285 = vmatprep.subr.mxu0 0.0
      %286 = vmatpush1.msra.mxu0 0.0
      %287 = vmatprep.subr.mxu0 0.0
      %288 = vmatpush1.msra.mxu0 0.0
      %289 = vmatprep.subr.mxu0 0.0
      %290 = vmatpush1.msra.mxu0 0.0
      %291 = vmatprep.subr.mxu0 0.0
      %292 = vmatpush1.msra.mxu0 0.0
      %293 = vmatprep.subr.mxu0 0.0
      %294 = vmatpush1.msra.mxu0 0.0
      %295 = vmatprep.subr.mxu0 0.0
      %296 = vmatpush1.msra.mxu0 0.0
      %297 = vmatprep.subr.mxu0 0.0
      %298 = vmatpush1.msra.mxu0 0.0
      %299 = vmatprep.subr.mxu0 0.0
      %300 = vmatpush1.msra.mxu0 0.0
      %301 = vmatprep.subr.mxu0 0.0
      %302 = vmatpush1.msra.mxu0 0.0
      %303 = vmatprep.subr.mxu0 0.0
      %304 = vmatpush1.msra.mxu0 0.0
      %305 = vmatprep.subr.mxu0 0.0
      %306 = vmatpush1.msra.mxu0 0.0
      %307 = vmatprep.subr.mxu0 0.0
      %308 = vmatpush1.msra.mxu0 0.0
      %309 = vmatprep.subr.mxu0 0.0
      %310 = vmatpush1.msra.mxu0 0.0
      %311 = vmatprep.subr.mxu0 0.0
      %312 = vmatpush1.msra.mxu0 0.0
      %313 = vmatprep.subr.mxu0 0.0
      %314 = vmatpush1.msra.mxu0 0.0
      %315 = vmatprep.subr.mxu0 0.0
      %316 = vmatpush1.msra.mxu0 0.0
      %317 = vmatprep.subr.mxu0 0.0
      %318 = vmatpush1.msra.mxu0 0.0
      %319 = vmatprep.subr.mxu0 0.0
      %320 = vmatpush1.msra.mxu0 0.0
      %321 = vmatprep.subr.mxu0 0.0
      %322 = vmatpush1.msra.mxu0 0.0
      %323 = vmatprep.subr.mxu0 0.0
      %324 = vmatpush1.msra.mxu0 0.0
      %325 = vmatprep.subr.mxu0 0.0
      %326 = vmatpush1.msra.mxu0 0.0
      %327 = vmatprep.subr.mxu0 0.0
      %328 = vmatpush1.msra.mxu0 0.0
      %329 = vmatprep.subr.mxu0 0.0
      %330 = vmatpush1.msra.mxu0 0.0
      %331 = vmatprep.subr.mxu0 0.0
      %332 = vmatpush1.msra.mxu0 0.0
      %333 = vmatprep.subr.mxu0 0.0
      %334 = vmatpush1.msra.mxu0 0.0
      %335 = vmatprep.mubr.f32.mxu0 0.0
      %336 = vmatmul.mubr.f32.gmra.mrb[0].mxu0 %v83
      %v337 = vpop.f32.mrb[0].mxu0
      %v338 = vadd.f32 0.0, %v337
      %v339 = vpop.f32.mrb[0].mxu0
      %340 = vdwg.mxu0
      %v341 = vld [vmem:[%s6] sm:$0xff]
      %v342 = vsub.f32 %v338, %v341
      %v343 = vmul.f32 %v266, %v266
      %vm344 = vcmask 64512
      %v345 = vsel %vm344, %v343, 0.0
      %346 = vadd.xlane.f32.xlu0 %v345
      %v347 = vpop.xlane.xlu0 %346
      %v348 = vrot.slane %v347, 4
      %v349 = vadd.f32 %v347, %v348
      %v350 = vrot.slane %v349, 2
      %v351 = vadd.f32 %v349, %v350
      %v352 = vrot.slane %v351, 1
      %v353 = vadd.f32 %v351, %v352
      %s354 = vtos %v353
      %s355 = smul.f32 %s354, 0.5
      %v356 = vmul.f32 %v342, %v342
      %vm357 = vcmask 130048
      %v358 = vsel %vm357, %v356, 0.0
      %359 = vadd.xlane.f32.xlu0 %v358
      %v360 = vpop.xlane.xlu0 %359
      %v361 = vrot.slane %v360, 4
      %v362 = vadd.f32 %v360, %v361
      %v363 = vrot.slane %v362, 2
      %v364 = vadd.f32 %v362, %v363
      %v365 = vrot.slane %v364, 1
      %v366 = vadd.f32 %v364, %v365
      %s367 = vtos %v366
      %s368 = sadd.f32 %s355, %s367
      %p369 = scmp.eq.s32.totalorder 0, 0
      %s370 = scalar_select %p369, %s368, 0.0
      %v371 = vld [vmem:[#allocation2] sm:$0xff]
      %v372 = vsel %vm185, %v371, 0.0
      %373 = vadd.xlane.f32.xlu0 %v372
      %v374 = vpop.xlane.xlu0 %373
      %v375 = vrot.slane %v374, 4
      %v376 = vadd.f32 %v374, %v375
      %v377 = vrot.slane %v376, 2
      %v378 = vadd.f32 %v376, %v377
      %v379 = vrot.slane %v378, 1
      %v380 = vadd.f32 %v378, %v379
      %s381 = vtos %v380
      %s382 = sadd.f32 %s381, %s370
      %v383 = vstv %s382
      %384 = vst [vmem:[#allocation3] sm:$0xff] %v383
    $region37: #{tpu_custom_call.1} parent=1 // pred_fallthru
      _
    // Predicated region
    $region38: #{tpu_custom_call.1} parent=1 // pred_check
      _
    $region39: #{tpu_custom_call.1} parent=1 // pred_check_branch
      %386 = sbr.rel (0) target = $region41
    $region40: #{tpu_custom_call.1} parent=1 // pred_region
      %s388 = ssub.s32 128, 128
      %389 = vsyncadd [#allocation4], %s388
      %s391 = sshll.u32 [#allocation3], 4
      %s392 = int_to_ptr.vmem [resolvable:$true] %s391
      %394 = dma.vmem_to_hbm [thread:$0]  %s392, 128, %s7, [#allocation4]
    $region41: #{tpu_custom_call.1} parent=1 // pred_fallthru
      _
    // Predicated region
    $region42: #{tpu_custom_call.1} parent=1 // pred_check
      _
    $region43: #{tpu_custom_call.1} parent=1 // pred_check_branch
      %396 = sbr.rel (0) target = $region45
    $region44: #{tpu_custom_call.1} parent=1 // pred_region
      %397 = dma.done [#allocation4], 128
    $region45: #{tpu_custom_call.1} parent=1 // pred_fallthru
      _
    %398 = vsyncpa [#allocation4], 1

</llo_original>
